<compile_context>
chip_gen: v6e
topology: v6e:2x2x1
jax: 0.10.0
libtpu: 0.0.40
codegen_flags: <defaults>
</compile_context>

<pallas_src>
import functools

import jax
import jax.numpy as jnp
from jax.experimental import pallas as pl
from jax.experimental.pallas import tpu as pltpu

_LANES = 128           # vreg lane width
_SUBLANES = 8          # vreg sublane count (f32)
_MAX_TILE_ROWS = 2048  # (2048, 128) f32 tile = 1 MiB; 2 inputs x 2 buffers = 4 MiB VMEM


def _make_disc_loss_kernel(n_valid: int, tile_rows: int, blocks_per_split: int):
    """Kernel closure.

    n_valid          -- true (unpadded) element count; any global element index
                        >= n_valid is masked to zero contribution.
    tile_rows        -- rows per input block (multiple of 8).
    blocks_per_split -- number of "arbitrary" reduction steps per parallel split.
    """

    def kernel(real_ref, fake_ref, out_ref):
        s = pl.program_id(0)   # parallel split (one per TensorCore on v7x)
        i = pl.program_id(1)   # sequential reduction step within the split

        # Init this split's resident (8, 128) accumulator (= output block).
        @pl.when(i == 0)
        def _():
            out_ref[...] = jnp.zeros_like(out_ref)

        # Intended (unclamped) tile position -> global element index of every
        # element in the block.  Out-of-range elements (vreg-alignment padding,
        # partial last block, or a clamped duplicate block) are forced to
        # real=1, fake=0 BEFORE the log, i.e. contribute exactly -log(1) = 0.
        block_idx = s * blocks_per_split + i
        row0 = block_idx * tile_rows
        row = jax.lax.broadcasted_iota(jnp.int32, (tile_rows, _LANES), 0)
        lane = jax.lax.broadcasted_iota(jnp.int32, (tile_rows, _LANES), 1)
        elem_idx = (row0 + row) * _LANES + lane
        valid = elem_idx < n_valid

        real = jnp.where(valid, real_ref[...].astype(jnp.float32), 1.0)
        fake = jnp.where(valid, fake_ref[...].astype(jnp.float32), 0.0)

        # Fused EUP log: -(log(r) + log(1-f)) == -log(r * (1 - f)) for r, f in (0, 1).
        elem = -jnp.log(real * (1.0 - fake))

        # VALU-only accumulate: fold the tile's (8, 128) vregs into the
        # resident output block.  No per-step cross-lane reduce.
        out_ref[...] += jnp.sum(
            elem.reshape(tile_rows // _SUBLANES, _SUBLANES, _LANES), axis=0)

    return kernel


@functools.partial(jax.jit, static_argnames=("max_tile_rows",))
def discriminator_loss(dis_real_preds: jax.Array, dis_fake_preds: jax.Array,
                       *, max_tile_rows: int = _MAX_TILE_ROWS) -> jax.Array:
    assert dis_real_preds.shape[0] == dis_fake_preds.shape[0], (
        "Batch sizes of real and fake predictions must match")

    # Layout plumbing: broadcast to a common shape and flatten.
    real, fake = jnp.broadcast_arrays(dis_real_preds, dis_fake_preds)
    real_flat = real.reshape(-1)
    fake_flat = fake.reshape(-1)
    n = real_flat.shape[0]

    # Pad only up to the next (8, 128) vreg boundary (<= 1023 elements) so the
    # flat vector reshapes into a lane-dense (rows, 128) slab.  Static no-op
    # when n is already 1024-aligned; tile alignment is handled by partial
    # blocks + in-kernel masking instead of padding.
    rows = pl.cdiv(n, _LANES)
    rows_padded = pl.cdiv(rows, _SUBLANES) * _SUBLANES
    pad = rows_padded * _LANES - n
    if pad:
        real_flat = jnp.pad(real_flat, (0, pad))  # pad values are masked in-kernel
        fake_flat = jnp.pad(fake_flat, (0, pad))
    real2d = real_flat.reshape(rows_padded, _LANES)
    fake2d = fake_flat.reshape(rows_padded, _LANES)

    max_tile_rows = max(_SUBLANES, (max_tile_rows // _SUBLANES) * _SUBLANES)
    tile_rows = min(max_tile_rows, rows_padded)
    total_blocks = pl.cdiv(rows_padded, tile_rows)

    # Two-way "parallel" split over rows: uses both TensorCores on v7x,
    # harmless (sequential) on single-TC v5e/v6e.
    num_splits = 2 if total_blocks >= 2 else 1
    blocks_per_split = pl.cdiv(total_blocks, num_splits)
    overshoot = num_splits * blocks_per_split - total_blocks  # 0 or 1

    if overshoot:
        # Clamp the DMA so it stays in bounds; the duplicated tile contributes
        # nothing because the kernel masks by the *intended* element index.
        def in_index_map(s, i):
            return (jnp.minimum(s * blocks_per_split + i, total_blocks - 1), 0)
    else:
        def in_index_map(s, i):
            return (s * blocks_per_split + i, 0)

    in_spec = pl.BlockSpec((tile_rows, _LANES), in_index_map)
    # NOTE: pipeline_mode=pl.Buffered(3) on the input specs is a cheap sweep
    # candidate with tiles this large; left at the default double buffer.

    partials = pl.pallas_call(
        _make_disc_loss_kernel(n, tile_rows, blocks_per_split),
        out_shape=jax.ShapeDtypeStruct((num_splits * _SUBLANES, _LANES), jnp.float32),
        grid=(num_splits, blocks_per_split),
        in_specs=[in_spec, in_spec],
        out_specs=pl.BlockSpec((_SUBLANES, _LANES), lambda s, i: (s, 0)),
        compiler_params=pltpu.CompilerParams(
            dimension_semantics=("parallel", "arbitrary")),
    )(real2d, fake2d)

    # Tiny final cross-lane reduce + mean scaling on the (num_splits*8, 128)
    # partial slab -- done once, outside the kernel's hot loop.
    return jnp.sum(partials) / n


if __name__ == "__main__":
    key = jax.random.PRNGKey(0)
    k1, k2, k3, k4 = jax.random.split(key, 4)

    # Small case matching typical usage: (batch, 1) probabilities in (0, 1).
    batch = 8
    dis_real_preds = jax.random.uniform(k1, (batch, 1), jnp.float32, 0.05, 0.95)
    dis_fake_preds = jax.random.uniform(k2, (batch, 1), jnp.float32, 0.05, 0.95)

    loss = discriminator_loss(dis_real_preds, dis_fake_preds)
    jax.block_until_ready(loss)

    ref = jnp.mean(-(jnp.log(dis_real_preds) + jnp.log(1.0 - dis_fake_preds)))
    assert jnp.allclose(loss, ref, rtol=1e-5, atol=1e-6), (loss, ref)

    # Larger, unaligned case exercising the multi-block grid, the 2-way
    # parallel split, DMA index clamping, and the in-kernel tail mask
    # (deliberately tiny tiles to hit every path).
    n_big = 9000
    real_big = jax.random.uniform(k3, (n_big,), jnp.float32, 0.05, 0.95)
    fake_big = jax.random.uniform(k4, (n_big,), jnp.float32, 0.05, 0.95)
    loss_big = discriminator_loss(real_big, fake_big, max_tile_rows=16)
    jax.block_until_ready(loss_big)
    ref_big = jnp.mean(-(jnp.log(real_big) + jnp.log(1.0 - fake_big)))
    assert jnp.allclose(loss_big, ref_big, rtol=1e-4, atol=1e-5), (loss_big, ref_big)

    print("KERNEL_OK")
</pallas_src>

<mosaic_0001>
module attributes {stable_mosaic.version = 11 : i64} {
  func.func @kernel(%arg0: i32, %arg1: i32, %arg2: memref<8x128xf32, #tpu.memory_space<vmem>>, %arg3: memref<8x128xf32, #tpu.memory_space<vmem>>, %arg4: memref<8x128xf32, #tpu.memory_space<vmem>>) attributes {dimension_semantics = [#tpu.dimension_semantics<parallel>, #tpu.dimension_semantics<arbitrary>], iteration_bounds = array<i64: 1, 1>, scalar_prefetch = 0 : i64, scratch_operands = 0 : i64, tpu.core_type = #tpu.core_type<tc>, window_params = [{transform_indices = @transform_0, window_bounds = array<i64: 8, 128>}, {transform_indices = @transform_1, window_bounds = array<i64: 8, 128>}, {transform_indices = @transform_2, window_bounds = array<i64: 8, 128>}]} {
    %c0_i32 = arith.constant 0 : i32
    %0 = arith.cmpi eq, %arg1, %c0_i32 : i32
    %1 = arith.extui %0 : i1 to i32
    %c0_i32_0 = arith.constant 0 : i32
    %2 = arith.cmpi ne, %1, %c0_i32_0 : i32
    scf.if %2 {
      %cst_13 = arith.constant 0.000000e+00 : f32
      %32 = vector.broadcast %cst_13 : f32 to vector<8x128xf32>
      %c0_14 = arith.constant 0 : index
      %c0_15 = arith.constant 0 : index
      %33 = vector.load %arg4[%c0_14, %c0_15] : memref<8x128xf32, #tpu.memory_space<vmem>>, vector<8x128xf32>
      tpu.vector_store %arg4[%c0_14, %c0_15], %32 {strides = array<i32>} : memref<8x128xf32, #tpu.memory_space<vmem>>, vector<8x128xf32>,
    } else {
    }
    %c1_i32 = arith.constant 1 : i32
    %3 = arith.muli %arg0, %c1_i32 : i32
    %4 = arith.addi %3, %arg1 : i32
    %c8_i32 = arith.constant 8 : i32
    %5 = arith.muli %4, %c8_i32 : i32
    %6 = tpu.iota {dimensions = array<i32: 0>} : vector<8x128xi32>
    %7 = tpu.iota {dimensions = array<i32: 1>} : vector<8x128xi32>
    %8 = vector.broadcast %5 : i32 to vector<8x128xi32>
    %9 = arith.addi %8, %6 : vector<8x128xi32>
    %c128_i32 = arith.constant 128 : i32
    %10 = vector.broadcast %c128_i32 : i32 to vector<8x128xi32>
    %11 = arith.muli %9, %10 : vector<8x128xi32>
    %12 = arith.addi %11, %7 : vector<8x128xi32>
    %c8_i32_1 = arith.constant 8 : i32
    %13 = vector.broadcast %c8_i32_1 : i32 to vector<8x128xi32>
    %14 = arith.cmpi slt, %12, %13 : vector<8x128xi32>
    %c0 = arith.constant 0 : index
    %c0_2 = arith.constant 0 : index
    %15 = vector.load %arg2[%c0, %c0_2] : memref<8x128xf32, #tpu.memory_space<vmem>>, vector<8x128xf32>
    %cst = arith.constant 1.000000e+00 : f32
    %16 = vector.broadcast %cst : f32 to vector<8x128xf32>
    %17 = arith.select %14, %15, %16 : vector<8x128xi1>, vector<8x128xf32>
    %c0_3 = arith.constant 0 : index
    %c0_4 = arith.constant 0 : index
    %18 = vector.load %arg3[%c0_3, %c0_4] : memref<8x128xf32, #tpu.memory_space<vmem>>, vector<8x128xf32>
    %cst_5 = arith.constant 0.000000e+00 : f32
    %19 = vector.broadcast %cst_5 : f32 to vector<8x128xf32>
    %20 = arith.select %14, %18, %19 : vector<8x128xi1>, vector<8x128xf32>
    %cst_6 = arith.constant 1.000000e+00 : f32
    %21 = vector.broadcast %cst_6 : f32 to vector<8x128xf32>
    %22 = arith.subf %21, %20 : vector<8x128xf32>
    %23 = arith.mulf %17, %22 : vector<8x128xf32>
    %24 = math.log %23 : vector<8x128xf32>
    %cst_7 = arith.constant 0.000000e+00 : f32
    %25 = vector.broadcast %cst_7 : f32 to vector<8x128xf32>
    %26 = arith.subf %25, %24 : vector<8x128xf32>
    %c0_8 = arith.constant 0 : index
    %c0_9 = arith.constant 0 : index
    %27 = vector.load %arg4[%c0_8, %c0_9] : memref<8x128xf32, #tpu.memory_space<vmem>>, vector<8x128xf32>
    %28 = vector.shape_cast %26 : vector<8x128xf32> to vector<1x8x128xf32>
    %cst_10 = arith.constant dense<0.000000e+00> : vector<8x128xf32>
    %29 = vector.multi_reduction <add>, %28, %cst_10 [0] : vector<1x8x128xf32> to vector<8x128xf32>
    %30 = arith.addf %27, %29 : vector<8x128xf32>
    %c0_11 = arith.constant 0 : index
    %c0_12 = arith.constant 0 : index
    %31 = vector.load %arg4[%c0_11, %c0_12] : memref<8x128xf32, #tpu.memory_space<vmem>>, vector<8x128xf32>
    tpu.vector_store %arg4[%c0_11, %c0_12], %30 {strides = array<i32>} : memref<8x128xf32, #tpu.memory_space<vmem>>, vector<8x128xf32>,
    return
  }
  func.func @transform_0(%arg0: i32, %arg1: i32) -> (i32, i32) {
    %c1_i32 = arith.constant 1 : i32
    %0 = arith.muli %arg0, %c1_i32 : i32
    %1 = arith.addi %0, %arg1 : i32
    %c0_i32 = arith.constant 0 : i32
    %c0_i32_0 = arith.constant 0 : i32
    return %1, %c0_i32 : i32, i32
  }
  func.func @transform_1(%arg0: i32, %arg1: i32) -> (i32, i32) {
    %c1_i32 = arith.constant 1 : i32
    %0 = arith.muli %arg0, %c1_i32 : i32
    %1 = arith.addi %0, %arg1 : i32
    %c0_i32 = arith.constant 0 : i32
    %c0_i32_0 = arith.constant 0 : i32
    return %1, %c0_i32 : i32, i32
  }
  func.func @transform_2(%arg0: i32, %arg1: i32) -> (i32, i32) {
    %c0_i32 = arith.constant 0 : i32
    %c0_i32_0 = arith.constant 0 : i32
    return %arg0, %c0_i32 : i32, i32
  }
}

</mosaic_0001>

<llo_original>
// kernel: discriminator_loss.1
$region0: #{discriminator_loss.1}
  #allocation0 [shape = 'u32[]', space=smem, size = 0x4, offset = 0x4, fixed_abs, tag = 'smem constant byte address 0x4 - core index']
  #allocation1 [shape = 'u32[144,128]{1,0:T(1,128)}', space=vmem, size = 0x12000, scoped, tag = 'internal scratch']
  %s0 = inlined_call_operand.vmem [shape: f32[8,128], index: 0, kind: input, shape index: {}]
  %s1 = inlined_call_operand.vmem [shape: f32[8,128], index: 1, kind: input, shape index: {}]
  %s2 = inlined_call_operand.vmem [shape: f32[8,128], index: 2, kind: output, shape index: {}]
  %s3 = sld [smem:[#allocation0]]
  $region22: #{discriminator_loss.1} parent=0
    _
  %s5 = ssub.s32 1, %s3
  %s6 = scalar_select 0, %s5, %s3
  // Predicated region
  $region2: #{discriminator_loss.1} parent=0 // pred_check
    _
  $region3: #{discriminator_loss.1} parent=0 // pred_check_branch
    %8 = sbr.rel (0) target = $region5
  $region4: #{discriminator_loss.1} parent=0 // pred_region
    %s9 = sadd.s32 0, 0
    %p10 = scmp.lt.s32.totalorder %s9, 0
    %s11 = scalar_select %p10, %s9, 0
    %s12 = smul.addr %s11, 8
    %s13 = scalar_lea.vmem %s0, %s12
    %s14 = sadd.s32 0, 0
  $region5: #{discriminator_loss.1} parent=0 // pred_fallthru
    _
  // Predicated region
  $region6: #{discriminator_loss.1} parent=0 // pred_check
    _
  $region7: #{discriminator_loss.1} parent=0 // pred_check_branch
    %16 = sbr.rel (0) target = $region9
  $region8: #{discriminator_loss.1} parent=0 // pred_region
    %s17 = sadd.s32 0, 0
    %p18 = scmp.lt.s32.totalorder %s17, 0
    %s19 = scalar_select %p18, %s17, 0
    %s20 = smul.addr %s19, 8
    %s21 = scalar_lea.vmem %s1, %s20
    %s22 = sadd.s32 0, 0
  $region9: #{discriminator_loss.1} parent=0 // pred_fallthru
    _
  %s23 = sadd.s32 0, 0
  %p24 = scmp.lt.s32.totalorder %s23, 0
  %s25 = scalar_select %p24, %s23, 0
  %s26 = smul.addr %s25, 8
  %s27 = scalar_lea.vmem %s0, %s26
  %s28 = sadd.s32 0, 0
  %p29 = scmp.lt.s32.totalorder %s28, 0
  %s30 = scalar_select %p29, %s28, 0
  %s31 = smul.addr %s30, 8
  %s32 = scalar_lea.vmem %s1, %s31
  %s33 = sadd.s32 0, 0
  %p34 = scmp.lt.s32.totalorder %s33, 0
  %s35 = scalar_select %p34, %s33, 0
  %s36 = smul.addr %s35, 8
  %s37 = scalar_lea.vmem %s0, %s36
  %s38 = sadd.s32 0, 0
  %s39 = sadd.s32 0, 0
  %p40 = scmp.lt.s32.totalorder %s39, 0
  %s41 = scalar_select %p40, %s39, 0
  %s42 = smul.addr %s41, 8
  %s43 = scalar_lea.vmem %s1, %s42
  %s44 = sadd.s32 0, 0
  %p45 = scmp.eq.s32.totalorder 0, 0
  // Predicated region
  $region10: #{discriminator_loss.1} parent=0 // pred_check
    %p46 = pneg %p45
  $region11: #{discriminator_loss.1} parent=0 // pred_check_branch
    %48 = sbr.rel (%p46) target = $region13
  $region12: #{discriminator_loss.1} parent=0 // pred_region
    %49 = vst [vmem:[%s2] sm:$0xff] 0.0
  $region13: #{discriminator_loss.1} parent=0 // pred_fallthru
    _
  %s50 = sadd.s32 0, 0
  %s51 = smul.u32 %s50, 8
  %v52 = vlaneseq
  %v53 = vshrl.u32 %v52, 7
  %v54 = vlaneseq
  %v55 = vand.u32 %v54, 127
  %v56 = vstv %s51
  %v57 = vadd.s32 %v56, %v53
  %v58 = vmul.u32 %v57, 128
  %v59 = vadd.s32 %v58, %v55
  %vm60 = vcmp.lt.s32.totalorder %v59, 8
  %v61 = vld [vmem:[%s37] sm:$0xff]
  %v62 = vsel %vm60, %v61, 1.0
  %v63 = vld [vmem:[%s43] sm:$0xff]
  %v64 = vsel %vm60, %v63, 0.0
  %v65 = vsub.f32 1.0, %v64
  %v66 = vmul.f32 %v62, %v65
  %v67 = vlog2.pop %v66
  %v68 = vmul.f32 %v67, 0.6931472
  %v69 = vsub.f32 0.0, %v68
  %v70 = vld [vmem:[%s2] sm:$0xff]
  %v71 = vadd.f32 %v69, 0.0
  %v72 = vadd.f32 %v70, %v71
  %73 = vst [vmem:[%s2] sm:$0xff] %v72
  // Predicated region
  $region14: #{discriminator_loss.1} parent=0 // pred_check
    _
  $region15: #{discriminator_loss.1} parent=0 // pred_check_branch
    %75 = sbr.rel (0) target = $region17
  $region16: #{discriminator_loss.1} parent=0 // pred_region
    _
  $region17: #{discriminator_loss.1} parent=0 // pred_fallthru
    _
  // Predicated region
  $region18: #{discriminator_loss.1} parent=0 // pred_check
    _
  $region19: #{discriminator_loss.1} parent=0 // pred_check_branch
    %77 = sbr.rel (0) target = $region21
  $region20: #{discriminator_loss.1} parent=0 // pred_region
    _
  $region21: #{discriminator_loss.1} parent=0 // pred_fallthru
    _

</llo_original>
